<compile_context>
chip_gen: v5e
topology: v5e:2x2
jax: 0.10.0
libtpu: 0.0.40
codegen_flags: <defaults>
</compile_context>

<pallas_src>
import functools

import jax
import jax.numpy as jnp
from jax import lax
from jax.experimental import pallas as pl
from jax.experimental.pallas import tpu as pltpu


def _dice_ce_stats_kernel(x_ref, l_ref, o_ref,
                          cnt_ref, int_ref, psq_ref, nll_ref,
                          *, s_total: int, tile_s: int, ragged: bool):
    """One (batch, chunk, spatial-tile) step of the per-class statistics reduction.

    x_ref: (1, C, TS) logits tile (any float dtype, cast to f32 per tile)
    l_ref: (1, 1, TS) int32 label tile
    o_ref: (1, 1, C, 4) output stats block, written only on the last spatial step:
           [..., 0]=count, [..., 1]=intersect, [..., 2]=sum p^2, [..., 3]=sum nll
    cnt/int/psq/nll_ref: (C, 1) f32 VMEM scratch accumulators (resident per core).
    """
    C = x_ref.shape[1]
    TS = x_ref.shape[2]

    @pl.when(pl.program_id(2) == 0)
    def _init():
        cnt_ref[...] = jnp.zeros_like(cnt_ref)
        int_ref[...] = jnp.zeros_like(int_ref)
        psq_ref[...] = jnp.zeros_like(psq_ref)
        nll_ref[...] = jnp.zeros_like(nll_ref)

    x = x_ref[0].astype(jnp.float32)          # (C, TS)
    lbl = l_ref[0]                            # (1, TS) int32

    if ragged:
        # Only compiled in when the tile size does not divide S.  The mask MUST be
        # applied before max/exp: lanes past S hold undefined VMEM data.
        tile_idx = pl.program_id(1) * pl.num_programs(2) + pl.program_id(2)
        pos = tile_idx * tile_s + lax.broadcasted_iota(jnp.int32, (1, TS), 1)
        valid = pos < s_total                 # (1, TS) bool
        x = jnp.where(valid, x, 0.0)          # keep exp() finite on padded lanes
        lbl = jnp.where(valid, lbl, -1)       # -1 matches no class -> onehot == 0

    # Softmax / log-sum-exp over the class (sublane) axis.
    m = jnp.max(x, axis=0, keepdims=True)                 # (1, TS)
    ex = jnp.exp(x - m)                                   # (C, TS)  (EUP)
    denom = jnp.sum(ex, axis=0, keepdims=True)            # (1, TS)
    p = ex * pl.reciprocal(denom, approx=True)            # (C, TS)  no full-width divide
    if ragged:
        p = p * valid.astype(jnp.float32)                 # zero padded lanes (p^2 term)
    lse = m + jnp.log(denom)                              # (1, TS)  exact (CE path)

    # One-hot target via a class iota on sublanes.
    cls = lax.broadcasted_iota(jnp.int32, (C, TS), 0)
    oh = (cls == lbl).astype(jnp.float32)                 # (C, TS)

    cnt_ref[...] += jnp.sum(oh, axis=1, keepdims=True)            # pixels labeled c
    int_ref[...] += jnp.sum(p * oh, axis=1, keepdims=True)        # sum p_c over class-c pixels
    psq_ref[...] += jnp.sum(p * p, axis=1, keepdims=True)         # sum p_c^2 over all pixels
    nll_ref[...] += jnp.sum(oh * (lse - x), axis=1, keepdims=True)  # sum (lse - x_c) labeled c

    @pl.when(pl.program_id(2) == pl.num_programs(2) - 1)
    def _flush():
        o_ref[...] = jnp.concatenate(
            [cnt_ref[...], int_ref[...], psq_ref[...], nll_ref[...]], axis=1
        )[None, None]                                      # (1, 1, C, 4)


def _pick_spatial_tile(s_total: int, ts_cap: int):
    """Pick the lane tile.  Prefer a tile that divides S (no in-kernel masking)."""
    if s_total <= ts_cap:
        return s_total, False                  # single tile, full extent, no masking
    if s_total % 128 == 0:
        n128 = s_total // 128
        for k in range(ts_cap // 128, 0, -1):  # largest 128-multiple divisor <= cap
            if n128 % k == 0:
                ts = 128 * k
                if 8 * ts >= ts_cap:           # reject degenerate tiny divisors
                    return ts, False
                break
    return ts_cap, True                        # ragged last tile, masked in-kernel


def _dice_ce_stats(predict: jax.Array, label: jax.Array, *, tile_s: int = 32768) -> jax.Array:
    """Runs the Pallas reduction; returns global per-class stats of shape (C, 4)."""
    B, C = predict.shape[0], predict.shape[1]
    S = 1
    for d in predict.shape[2:]:
        S *= d

    x = predict.reshape(B, C, S)               # streamed in its HBM dtype (f32 or bf16)
    lbl = label
    if lbl.ndim == predict.ndim:               # (B, 1, spatial...) -> drop channel
        lbl = lbl[:, 0]
    lbl = lbl.reshape(B, 1, S).astype(jnp.int32)

    # VMEM-aware tile cap: ~10 full-width (c_pad, ts) f32 temporaries must fit in budget.
    c_pad = ((C + 7) // 8) * 8
    vmem_temps_budget = 24 * 1024 * 1024
    ts_cap = min(int(tile_s), vmem_temps_budget // (c_pad * 4 * 10))
    ts_cap = max(128, (ts_cap // 128) * 128)

    ts, ragged = _pick_spatial_tile(S, ts_cap)
    n_t = pl.cdiv(S, ts)                       # spatial tiles total
    n_chunks = 2 if (not ragged and n_t % 2 == 0) else 1   # extra parallel axis (v7x 2 TCs)
    n_s = n_t // n_chunks                      # spatial tiles per chunk

    kernel = functools.partial(_dice_ce_stats_kernel,
                               s_total=S, tile_s=ts, ragged=ragged)

    x_bytes = B * C * S * jnp.dtype(x.dtype).itemsize
    l_bytes = B * S * jnp.dtype(lbl.dtype).itemsize
    cost = pl.CostEstimate(
        flops=10 * B * C * S,
        transcendentals=B * C * S + B * S,     # exp per logit, log per pixel
        bytes_accessed=x_bytes + l_bytes + B * n_chunks * C * 4 * 4,
    )

    stats = pl.pallas_call(
        kernel,
        out_shape=jax.ShapeDtypeStruct((B, n_chunks, C, 4), jnp.float32),
        grid_spec=pltpu.PrefetchScalarGridSpec(
            num_scalar_prefetch=0,
            grid=(B, n_chunks, n_s),
            in_specs=[
                pl.BlockSpec((1, C, ts), lambda b, c, s: (b, 0, c * n_s + s)),
                pl.BlockSpec((1, 1, ts), lambda b, c, s: (b, 0, c * n_s + s)),
            ],
            out_specs=pl.BlockSpec((1, 1, C, 4), lambda b, c, s: (b, c, 0, 0)),
            scratch_shapes=[pltpu.VMEM((C, 1), jnp.float32)] * 4,
        ),
        compiler_params=pltpu.CompilerParams(
            # batch & spatial-chunk -> parallel (megacore on v7x); inner reduction -> arbitrary.
            dimension_semantics=("parallel", "parallel", "arbitrary"),
            vmem_limit_bytes=48 * 1024 * 1024,   # > v5e/v6e defaults, < v7x 64 MiB physical
        ),
        cost_estimate=cost,
    )(x, lbl)

    # Per-(batch, chunk) partials summed in the wrapper (enables the parallel axes).
    return jnp.sum(stats, axis=(0, 1))          # (C, 4)


def dice_ce_loss_parts(predict, label, num_classes, *, tile_s: int = 32768):
    """Returns (celoss, diceloss) as computed by the PyTorch module."""
    stats = _dice_ce_stats(predict, label, tile_s=tile_s)
    count = stats[:, 0]
    inter = stats[:, 1]
    psq = stats[:, 2]
    nll = stats[:, 3]

    # DiceLoss: classes 1..C-1, unit weights, smooth = 0.0001.
    smooth = 0.0001
    dice = (2.0 * inter[1:] + smooth) / (count[1:] + psq[1:] + smooth)
    diceloss = jnp.sum(1.0 - dice) / (num_classes - 1.0)

    # WeightedCrossEntropyLoss: w_c = 1 - count_c / N; weighted-mean CE.
    w = 1.0 - count / jnp.sum(count)
    celoss = jnp.sum(w * nll) / jnp.sum(w * count)
    return celoss, diceloss


def dice_ce_loss(predict, label, num_classes, alpha: float = 1.0, *, tile_s: int = 32768):
    """Pallas implementation of DiceCeLoss(num_classes, alpha).forward(predict, label)."""
    celoss, diceloss = dice_ce_loss_parts(predict, label, num_classes, tile_s=tile_s)
    loss = celoss + alpha * diceloss   # computed (as in the module) ...
    del loss                           # ... but the original forward returns celoss only
    return celoss


# ----------------------------- pure-JAX reference -----------------------------
def _dice_ce_ref(predict, label, num_classes):
    x = predict.astype(jnp.float32)                      # (B, C, H, W)
    lbl = label[:, 0] if label.ndim == predict.ndim else label   # (B, H, W)
    probs = jax.nn.softmax(x, axis=1)
    onehot = (lbl[:, None] ==
              jnp.arange(num_classes)[None, :, None, None]).astype(jnp.float32)

    smooth = 0.0001
    dl = 0.0
    for i in range(1, num_classes):
        p, t = probs[:, i], onehot[:, i]
        inter = jnp.sum(p * t)
        dice = (2.0 * inter + smooth) / (jnp.sum(t) + jnp.sum(p * p) + smooth)
        dl = dl + (1.0 - dice)
    diceloss = dl / (num_classes - 1.0)

    counts = jnp.stack([jnp.sum(lbl == c) for c in range(num_classes)]).astype(jnp.float32)
    w = 1.0 - counts / jnp.sum(counts)
    lse = jax.scipy.special.logsumexp(x, axis=1)          # (B, H, W)
    picked = jnp.take_along_axis(x, lbl[:, None], axis=1)[:, 0]
    nll = lse - picked
    wpix = w[lbl]
    celoss = jnp.sum(wpix * nll) / jnp.sum(wpix)
    return celoss, diceloss


if __name__ == "__main__":
    key = jax.random.PRNGKey(0)
    k1, k2 = jax.random.split(key)

    B, C, H, W = 2, 4, 16, 16
    predict = jax.random.normal(k1, (B, C, H, W), dtype=jnp.float32)
    label = jax.random.randint(k2, (B, 1, H, W), 0, C, dtype=jnp.int32)

    out = dice_ce_loss(predict, label, C)                 # module forward output (== celoss)
    ce, dl = dice_ce_loss_parts(predict, label, C)
    jax.block_until_ready(out)
    jax.block_until_ready((ce, dl))

    ce_ref, dl_ref = _dice_ce_ref(predict, label, C)
    assert jnp.allclose(out, ce_ref, rtol=1e-4, atol=1e-5), (out, ce_ref)
    assert jnp.allclose(ce, ce_ref, rtol=1e-4, atol=1e-5), (ce, ce_ref)
    # Dice uses the EUP approximate reciprocal in the softmax -> slightly looser tol.
    assert jnp.allclose(dl, dl_ref, rtol=5e-3, atol=5e-3), (dl, dl_ref)

    print("KERNEL_OK")
</pallas_src>

<mosaic_0001>
module attributes {stable_mosaic.version = 11 : i64} {
  func.func @_dice_ce_stats_kernel(%arg0: i32, %arg1: i32, %arg2: i32, %arg3: memref<1x4x256xf32, #tpu.memory_space<vmem>>, %arg4: memref<1x1x256xi32, #tpu.memory_space<vmem>>, %arg5: memref<1x1x4x4xf32, #tpu.memory_space<vmem>>, %arg6: memref<4x1xf32, #tpu.memory_space<vmem>>, %arg7: memref<4x1xf32, #tpu.memory_space<vmem>>, %arg8: memref<4x1xf32, #tpu.memory_space<vmem>>, %arg9: memref<4x1xf32, #tpu.memory_space<vmem>>) attributes {dimension_semantics = [#tpu.dimension_semantics<parallel>, #tpu.dimension_semantics<parallel>, #tpu.dimension_semantics<arbitrary>], iteration_bounds = array<i64: 2, 1, 1>, scalar_prefetch = 0 : i64, scratch_operands = 4 : i64, tpu.core_type = #tpu.core_type<tc>, window_params = [{transform_indices = @transform_0, window_bounds = array<i64: 1, 4, 256>}, {transform_indices = @transform_1, window_bounds = array<i64: 1, 1, 256>}, {transform_indices = @transform_2, window_bounds = array<i64: 1, 1, 4, 4>}]} {
    %c0_i32 = arith.constant 0 : i32
    %0 = arith.cmpi eq, %arg2, %c0_i32 : i32
    %1 = arith.extui %0 : i1 to i32
    %c0_i32_0 = arith.constant 0 : i32
    %2 = arith.cmpi ne, %1, %c0_i32_0 : i32
    scf.if %2 {
      %cst_29 = arith.constant 0.000000e+00 : f32
      %52 = vector.broadcast %cst_29 : f32 to vector<4x1xf32>
      %c0_30 = arith.constant 0 : index
      %c0_31 = arith.constant 0 : index
      %53 = vector.load %arg6[%c0_30, %c0_31] : memref<4x1xf32, #tpu.memory_space<vmem>>, vector<4x1xf32>
      tpu.vector_store %arg6[%c0_30, %c0_31], %52 {strides = array<i32>} : memref<4x1xf32, #tpu.memory_space<vmem>>, vector<4x1xf32>,
      %cst_32 = arith.constant 0.000000e+00 : f32
      %54 = vector.broadcast %cst_32 : f32 to vector<4x1xf32>
      %c0_33 = arith.constant 0 : index
      %c0_34 = arith.constant 0 : index
      %55 = vector.load %arg7[%c0_33, %c0_34] : memref<4x1xf32, #tpu.memory_space<vmem>>, vector<4x1xf32>
      tpu.vector_store %arg7[%c0_33, %c0_34], %54 {strides = array<i32>} : memref<4x1xf32, #tpu.memory_space<vmem>>, vector<4x1xf32>,
      %cst_35 = arith.constant 0.000000e+00 : f32
      %56 = vector.broadcast %cst_35 : f32 to vector<4x1xf32>
      %c0_36 = arith.constant 0 : index
      %c0_37 = arith.constant 0 : index
      %57 = vector.load %arg8[%c0_36, %c0_37] : memref<4x1xf32, #tpu.memory_space<vmem>>, vector<4x1xf32>
      tpu.vector_store %arg8[%c0_36, %c0_37], %56 {strides = array<i32>} : memref<4x1xf32, #tpu.memory_space<vmem>>, vector<4x1xf32>,
      %cst_38 = arith.constant 0.000000e+00 : f32
      %58 = vector.broadcast %cst_38 : f32 to vector<4x1xf32>
      %c0_39 = arith.constant 0 : index
      %c0_40 = arith.constant 0 : index
      %59 = vector.load %arg9[%c0_39, %c0_40] : memref<4x1xf32, #tpu.memory_space<vmem>>, vector<4x1xf32>
      tpu.vector_store %arg9[%c0_39, %c0_40], %58 {strides = array<i32>} : memref<4x1xf32, #tpu.memory_space<vmem>>, vector<4x1xf32>,
    } else {
    }
    %c0 = arith.constant 0 : index
    %c0_1 = arith.constant 0 : index
    %c0_2 = arith.constant 0 : index
    %3 = vector.load %arg3[%c0, %c0_1, %c0_2] : memref<1x4x256xf32, #tpu.memory_space<vmem>>, vector<1x4x256xf32>
    %4 = vector.shape_cast %3 : vector<1x4x256xf32> to vector<4x256xf32>
    %c0_3 = arith.constant 0 : index
    %c0_4 = arith.constant 0 : index
    %c0_5 = arith.constant 0 : index
    %5 = vector.load %arg4[%c0_3, %c0_4, %c0_5] : memref<1x1x256xi32, #tpu.memory_space<vmem>>, vector<1x1x256xi32>
    %6 = vector.shape_cast %5 : vector<1x1x256xi32> to vector<1x256xi32>
    %cst = arith.constant dense<0xFF800000> : vector<256xf32>
    %7 = vector.multi_reduction <maximumf>, %4, %cst [0] : vector<4x256xf32> to vector<256xf32>
    %8 = vector.shape_cast %7 : vector<256xf32> to vector<1x256xf32>
    %9 = vector.broadcast %8 : vector<1x256xf32> to vector<4x256xf32>
    %10 = arith.subf %4, %9 : vector<4x256xf32>
    %11 = math.exp %10 : vector<4x256xf32>
    %cst_6 = arith.constant dense<0.000000e+00> : vector<256xf32>
    %12 = vector.multi_reduction <add>, %11, %cst_6 [0] : vector<4x256xf32> to vector<256xf32>
    %13 = vector.shape_cast %12 : vector<256xf32> to vector<1x256xf32>
    %14 = tpu.reciprocal %13 {approx = true} : vector<1x256xf32> -> vector<1x256xf32>
    %15 = vector.broadcast %14 : vector<1x256xf32> to vector<4x256xf32>
    %16 = arith.mulf %11, %15 : vector<4x256xf32>
    %17 = math.log %13 : vector<1x256xf32>
    %18 = arith.addf %8, %17 : vector<1x256xf32>
    %19 = tpu.iota {dimensions = array<i32: 0>} : vector<4x256xi32>
    %20 = vector.broadcast %6 : vector<1x256xi32> to vector<4x256xi32>
    %21 = arith.cmpi eq, %19, %20 : vector<4x256xi32>
    %22 = arith.extui %21 : vector<4x256xi1> to vector<4x256xi32>
    %23 = arith.sitofp %22 : vector<4x256xi32> to vector<4x256xf32>
    %c0_7 = arith.constant 0 : index
    %c0_8 = arith.constant 0 : index
    %24 = vector.load %arg6[%c0_7, %c0_8] : memref<4x1xf32, #tpu.memory_space<vmem>>, vector<4x1xf32>
    %cst_9 = arith.constant dense<0.000000e+00> : vector<4xf32>
    %25 = vector.multi_reduction <add>, %23, %cst_9 [1] : vector<4x256xf32> to vector<4xf32>
    %26 = vector.shape_cast %25 : vector<4xf32> to vector<4x1xf32>
    %27 = arith.addf %24, %26 : vector<4x1xf32>
    %c0_10 = arith.constant 0 : index
    %c0_11 = arith.constant 0 : index
    %28 = vector.load %arg6[%c0_10, %c0_11] : memref<4x1xf32, #tpu.memory_space<vmem>>, vector<4x1xf32>
    tpu.vector_store %arg6[%c0_10, %c0_11], %27 {strides = array<i32>} : memref<4x1xf32, #tpu.memory_space<vmem>>, vector<4x1xf32>,
    %c0_12 = arith.constant 0 : index
    %c0_13 = arith.constant 0 : index
    %29 = vector.load %arg7[%c0_12, %c0_13] : memref<4x1xf32, #tpu.memory_space<vmem>>, vector<4x1xf32>
    %30 = arith.mulf %16, %23 : vector<4x256xf32>
    %cst_14 = arith.constant dense<0.000000e+00> : vector<4xf32>
    %31 = vector.multi_reduction <add>, %30, %cst_14 [1] : vector<4x256xf32> to vector<4xf32>
    %32 = vector.shape_cast %31 : vector<4xf32> to vector<4x1xf32>
    %33 = arith.addf %29, %32 : vector<4x1xf32>
    %c0_15 = arith.constant 0 : index
    %c0_16 = arith.constant 0 : index
    %34 = vector.load %arg7[%c0_15, %c0_16] : memref<4x1xf32, #tpu.memory_space<vmem>>, vector<4x1xf32>
    tpu.vector_store %arg7[%c0_15, %c0_16], %33 {strides = array<i32>} : memref<4x1xf32, #tpu.memory_space<vmem>>, vector<4x1xf32>,
    %c0_17 = arith.constant 0 : index
    %c0_18 = arith.constant 0 : index
    %35 = vector.load %arg8[%c0_17, %c0_18] : memref<4x1xf32, #tpu.memory_space<vmem>>, vector<4x1xf32>
    %36 = arith.mulf %16, %16 : vector<4x256xf32>
    %cst_19 = arith.constant dense<0.000000e+00> : vector<4xf32>
    %37 = vector.multi_reduction <add>, %36, %cst_19 [1] : vector<4x256xf32> to vector<4xf32>
    %38 = vector.shape_cast %37 : vector<4xf32> to vector<4x1xf32>
    %39 = arith.addf %35, %38 : vector<4x1xf32>
    %c0_20 = arith.constant 0 : index
    %c0_21 = arith.constant 0 : index
    %40 = vector.load %arg8[%c0_20, %c0_21] : memref<4x1xf32, #tpu.memory_space<vmem>>, vector<4x1xf32>
    tpu.vector_store %arg8[%c0_20, %c0_21], %39 {strides = array<i32>} : memref<4x1xf32, #tpu.memory_space<vmem>>, vector<4x1xf32>,
    %c0_22 = arith.constant 0 : index
    %c0_23 = arith.constant 0 : index
    %41 = vector.load %arg9[%c0_22, %c0_23] : memref<4x1xf32, #tpu.memory_space<vmem>>, vector<4x1xf32>
    %42 = vector.broadcast %18 : vector<1x256xf32> to vector<4x256xf32>
    %43 = arith.subf %42, %4 : vector<4x256xf32>
    %44 = arith.mulf %23, %43 : vector<4x256xf32>
    %cst_24 = arith.constant dense<0.000000e+00> : vector<4xf32>
    %45 = vector.multi_reduction <add>, %44, %cst_24 [1] : vector<4x256xf32> to vector<4xf32>
    %46 = vector.shape_cast %45 : vector<4xf32> to vector<4x1xf32>
    %47 = arith.addf %41, %46 : vector<4x1xf32>
    %c0_25 = arith.constant 0 : index
    %c0_26 = arith.constant 0 : index
    %48 = vector.load %arg9[%c0_25, %c0_26] : memref<4x1xf32, #tpu.memory_space<vmem>>, vector<4x1xf32>
    tpu.vector_store %arg9[%c0_25, %c0_26], %47 {strides = array<i32>} : memref<4x1xf32, #tpu.memory_space<vmem>>, vector<4x1xf32>,
    %c0_i32_27 = arith.constant 0 : i32
    %49 = arith.cmpi eq, %arg2, %c0_i32_27 : i32
    %50 = arith.extui %49 : i1 to i32
    %c0_i32_28 = arith.constant 0 : i32
    %51 = arith.cmpi ne, %50, %c0_i32_28 : i32
    scf.if %51 {
      %c0_29 = arith.constant 0 : index
      %c0_30 = arith.constant 0 : index
      %52 = vector.load %arg6[%c0_29, %c0_30] : memref<4x1xf32, #tpu.memory_space<vmem>>, vector<4x1xf32>
      %c0_31 = arith.constant 0 : index
      %c0_32 = arith.constant 0 : index
      %53 = vector.load %arg7[%c0_31, %c0_32] : memref<4x1xf32, #tpu.memory_space<vmem>>, vector<4x1xf32>
      %c0_33 = arith.constant 0 : index
      %c0_34 = arith.constant 0 : index
      %54 = vector.load %arg8[%c0_33, %c0_34] : memref<4x1xf32, #tpu.memory_space<vmem>>, vector<4x1xf32>
      %c0_35 = arith.constant 0 : index
      %c0_36 = arith.constant 0 : index
      %55 = vector.load %arg9[%c0_35, %c0_36] : memref<4x1xf32, #tpu.memory_space<vmem>>, vector<4x1xf32>
      %56 = tpu.concatenate %52, %53, %54, %55 in 1 : vector<4x1xf32>, vector<4x1xf32>, vector<4x1xf32>, vector<4x1xf32> -> vector<4x4xf32>
      %57 = vector.shape_cast %56 : vector<4x4xf32> to vector<1x1x4x4xf32>
      %c0_37 = arith.constant 0 : index
      %c0_38 = arith.constant 0 : index
      %c0_39 = arith.constant 0 : index
      %c0_40 = arith.constant 0 : index
      %58 = vector.load %arg5[%c0_37, %c0_38, %c0_39, %c0_40] : memref<1x1x4x4xf32, #tpu.memory_space<vmem>>, vector<1x1x4x4xf32>
      tpu.vector_store %arg5[%c0_37, %c0_38, %c0_39, %c0_40], %57 {strides = array<i32>} : memref<1x1x4x4xf32, #tpu.memory_space<vmem>>, vector<1x1x4x4xf32>,
    } else {
    }
    return
  }
  func.func @transform_0(%arg0: i32, %arg1: i32, %arg2: i32) -> (i32, i32, i32) {
    %c1_i32 = arith.constant 1 : i32
    %0 = arith.muli %arg1, %c1_i32 : i32
    %1 = arith.addi %0, %arg2 : i32
    %c0_i32 = arith.constant 0 : i32
    %c0_i32_0 = arith.constant 0 : i32
    return %arg0, %c0_i32, %1 : i32, i32, i32
  }
  func.func @transform_1(%arg0: i32, %arg1: i32, %arg2: i32) -> (i32, i32, i32) {
    %c1_i32 = arith.constant 1 : i32
    %0 = arith.muli %arg1, %c1_i32 : i32
    %1 = arith.addi %0, %arg2 : i32
    %c0_i32 = arith.constant 0 : i32
    %c0_i32_0 = arith.constant 0 : i32
    return %arg0, %c0_i32, %1 : i32, i32, i32
  }
  func.func @transform_2(%arg0: i32, %arg1: i32, %arg2: i32) -> (i32, i32, i32, i32) {
    %c0_i32 = arith.constant 0 : i32
    %c0_i32_0 = arith.constant 0 : i32
    %c0_i32_1 = arith.constant 0 : i32
    return %arg0, %arg1, %c0_i32, %c0_i32_0 : i32, i32, i32, i32
  }
}

</mosaic_0001>

<llo_original>
// kernel: tpu_custom_call.1
$region0: #{tpu_custom_call.1}
  #allocation0 [shape = 'u32[]', space=smem, size = 0x4, offset = 0x4, fixed_abs, tag = 'smem constant byte address 0x4 - core index']
  #allocation1 [shape = 'u32[72,128]{1,0:T(1,128)}', space=vmem, size = 0x9000, scoped, tag = 'internal scratch']
  #allocation2 [shape = 'f32[4,1]{1,0:T(4,128)}', space=vmem, size = 0x800, scoped, tag = 'scratch operand']
  #allocation3 [shape = 'f32[4,1]{1,0:T(4,128)}', space=vmem, size = 0x800, scoped, tag = 'scratch operand']
  #allocation4 [shape = 'f32[4,1]{1,0:T(4,128)}', space=vmem, size = 0x800, scoped, tag = 'scratch operand']
  #allocation5 [shape = 'f32[4,1]{1,0:T(4,128)}', space=vmem, size = 0x800, scoped, tag = 'scratch operand']
  %s0 = inlined_call_operand.hbm [shape: f32[2,4,256], index: 0, kind: input, shape index: {}]
  %s1 = inlined_call_operand.hbm [shape: s32[2,1,256], index: 1, kind: input, shape index: {}]
  %s2 = inlined_call_operand.hbm [shape: f32[2,1,4,4], index: 2, kind: output, shape index: {}]
  %s3 = sld [smem:[#allocation0]]
  $region57: #{tpu_custom_call.1} parent=0
    _
  %s5 = ssub.s32 1, %s3
  %s6 = scalar_select 0, %s5, %s3
  $region1: #{tpu_custom_call.1} parent=0
    #allocation6 [shape = 'u8[8192]{0}', space=vmem, size = 0x2000, scoped, tag = 'input window, operand 0']
    #allocation7 [shape = 's32[2]{0}', space=sflag, size = 0x8, scoped, tag = 'scoped memory for tpu_custom_call.1']
    #allocation8 [shape = 's32[2]{0}', space=sflag, size = 0x8, scoped, tag = 'scoped memory for tpu_custom_call.1']
    #allocation9 [shape = 'u8[2048]{0}', space=vmem, size = 0x800, scoped, tag = 'input window, operand 1']
    #allocation10 [shape = 's32[2]{0}', space=sflag, size = 0x8, scoped, tag = 'scoped memory for tpu_custom_call.1']
    #allocation11 [shape = 'u8[4096]{0}', space=vmem, size = 0x1000, scoped, tag = 'output window, operand 0']
    %7 = vsyncpa [#allocation7], 0
    %s8 = scalar_lea.sflag [#allocation7], 1
    %9 = vsyncpa %s8, 0
    %10 = vsyncpa [#allocation10], 0
    %s11 = scalar_lea.sflag [#allocation10], 1
    %12 = vsyncpa %s11, 0
    %13 = vsyncpa [#allocation8], 0
    %s14 = scalar_lea.sflag [#allocation8], 1
    %15 = vsyncpa %s14, 0
    loop: start=0, step=1, limit=4
    $region2: #{tpu_custom_call.1} parent=1 // loop_pre_header
      _
    $region3: #{tpu_custom_call.1} parent=1 // loop_header
      %s17 = sphi 0, %s21
      %p18 = scmp.ge.s32.totalorder %s17, 4
      %s24 = sphi 0, %s43
      %s25 = sphi 0, %s39
      %s26 = sphi 0, %s35
      %s27 = sphi 0, %s24
      %s28 = sphi 0, %s25
      %s29 = sphi 0, %s26
      %s30 = sphi 0, %s27
      %s31 = sphi 0, %s28
      %s32 = sphi 0, %s29
      %s50 = sphi 0, %s52
      %s53 = sphi 0, %s50
      %s54 = sphi 0, %s53
      %s70 = sphi 0, %s54
      %s80 = sphi 0, %s82
      %s83 = sphi 0, %s80
      %s84 = sphi 0, %s83
      %s100 = sphi 0, %s84
      %s108 = sphi 0, %s110
      %s111 = sphi 0, %s108
      %s112 = sphi 0, %s111
      %s128 = sphi 0, %s112
    $region4: #{tpu_custom_call.1} parent=1 // loop_header_branch
      %20 = sbr.rel (%p18) target = $region8
    $region5: #{tpu_custom_call.1} parent=1 // loop_body
      %s22 = ssub.s32 %s17, 1
      %s23 = ssub.s32 %s17, 2
      %s33 = sadd.s32 1, %s26
      %p34 = scmp.ge.s32.totalorder %s33, 1
      %s35 = scalar_select %p34, 0, %s33
      %s36 = sadd.s32 1, %s25
      %s37 = scalar_select %p34, %s36, %s25
      %p38 = scmp.ge.s32.totalorder %s37, 1
      %s39 = scalar_select %p38, 0, %s37
      %s40 = sadd.s32 1, %s24
      %s41 = scalar_select %p38, %s40, %s24
      %p42 = scmp.ge.s32.totalorder %s41, 2
      %s43 = scalar_select %p42, 0, %s41
      %s44 = sadd.s32 %s25, %s26
      %s45 = sadd.s32 %s39, %s35
      %s46 = ssub.s32 %s24, %s43
      %s47 = ssub.s32 %s44, %s45
      %s48 = sor.u32 %s46, %s47
      %p49 = scmp.eq.s32.totalorder %s48, 0
      %s51 = sadd.s32 %s50, 1
      %s52 = scalar_select %p49, %s50, %s51
      %p55 = pneg %p49
      %p56 = scmp.eq.s32.totalorder %s17, 1
      %p57 = por %p55, %p56
      %p58 = scmp.ne.s32.totalorder %s50, %s53
      %p59 = scmp.eq.s32.totalorder %s17, 0
      %p60 = por %p58, %p59
      %p61 = scmp.ne.s32.totalorder %s50, %s53
      %p62 = scmp.eq.s32.totalorder %s22, 1
      %p63 = por %p61, %p62
      %p64 = scmp.ne.s32.totalorder %s53, %s54
      %p65 = scmp.eq.s32.totalorder %s22, 0
      %p66 = por %p64, %p65
      %p67 = scmp.ne.s32.totalorder %s53, %s54
      %p68 = scmp.eq.s32.totalorder %s23, 1
      %p69 = por %p67, %p68
      %p71 = scmp.ne.s32.totalorder %s54, %s70
      %p72 = scmp.eq.s32.totalorder %s23, 0
      %p73 = por %p71, %p72
      %s74 = sadd.s32 %s25, %s26
      %s75 = sadd.s32 %s39, %s35
      %s76 = ssub.s32 %s24, %s43
      %s77 = ssub.s32 %s74, %s75
      %s78 = sor.u32 %s76, %s77
      %p79 = scmp.eq.s32.totalorder %s78, 0
      %s81 = sadd.s32 %s80, 1
      %s82 = scalar_select %p79, %s80, %s81
      %p85 = pneg %p79
      %p86 = scmp.eq.s32.totalorder %s17, 1
      %p87 = por %p85, %p86
      %p88 = scmp.ne.s32.totalorder %s80, %s83
      %p89 = scmp.eq.s32.totalorder %s17, 0
      %p90 = por %p88, %p89
      %p91 = scmp.ne.s32.totalorder %s80, %s83
      %p92 = scmp.eq.s32.totalorder %s22, 1
      %p93 = por %p91, %p92
      %p94 = scmp.ne.s32.totalorder %s83, %s84
      %p95 = scmp.eq.s32.totalorder %s22, 0
      %p96 = por %p94, %p95
      %p97 = scmp.ne.s32.totalorder %s83, %s84
      %p98 = scmp.eq.s32.totalorder %s23, 1
      %p99 = por %p97, %p98
      %p101 = scmp.ne.s32.totalorder %s84, %s100
      %p102 = scmp.eq.s32.totalorder %s23, 0
      %p103 = por %p101, %p102
      %s104 = ssub.s32 %s24, %s43
      %s105 = ssub.s32 %s25, %s39
      %s106 = sor.u32 %s104, %s105
      %p107 = scmp.eq.s32.totalorder %s106, 0
      %s109 = sadd.s32 %s108, 1
      %s110 = scalar_select %p107, %s108, %s109
      %p113 = pneg %p107
      %p114 = scmp.eq.s32.totalorder %s17, 1
      %p115 = por %p113, %p114
      %p116 = scmp.ne.s32.totalorder %s108, %s111
      %p117 = scmp.eq.s32.totalorder %s17, 0
      %p118 = por %p116, %p117
      %p119 = scmp.ne.s32.totalorder %s108, %s111
      %p120 = scmp.eq.s32.totalorder %s22, 1
      %p121 = por %p119, %p120
      %p122 = scmp.ne.s32.totalorder %s111, %s112
      %p123 = scmp.eq.s32.totalorder %s22, 0
      %p124 = por %p122, %p123
      %p125 = scmp.ne.s32.totalorder %s111, %s112
      %p126 = scmp.eq.s32.totalorder %s23, 1
      %p127 = por %p125, %p126
      %p129 = scmp.ne.s32.totalorder %s112, %s128
      %p130 = scmp.eq.s32.totalorder %s23, 0
      %p131 = por %p129, %p130
      %p132 = scmp.le.s32.totalorder 1, %s17
      %p133 = scmp.lt.s32.totalorder %s17, 3
      %p134 = pnand %p132, %p133
      %p135 = pneg %p134
      // Predicated region
      $region9: #{tpu_custom_call.1} parent=5 // pred_check
        _
      $region10: #{tpu_custom_call.1} parent=5 // pred_check_branch
        %137 = sbr.rel (%p134) target = $region12
      $region11: #{tpu_custom_call.1} parent=5 // pred_region
        %s138 = ssub.s32 %s17, 1
      $region12: #{tpu_custom_call.1} parent=5 // pred_fallthru
        _
      %p139 = scmp.lt.s32.totalorder %s17, 2
      // Predicated region
      $region13: #{tpu_custom_call.1} parent=5 // pred_check
        %p140 = pneg %p139
      $region14: #{tpu_custom_call.1} parent=5 // pred_check_branch
        %142 = sbr.rel (%p140) target = $region16
      $region15: #{tpu_custom_call.1} parent=5 // pred_region
        // Predicated region
        $region17: #{tpu_custom_call.1} parent=15 // pred_check
          %p143 = pneg %p60
        $region18: #{tpu_custom_call.1} parent=15 // pred_check_branch
          %145 = sbr.rel (%p143) target = $region20
        $region19: #{tpu_custom_call.1} parent=15 // pred_region
          %s146 = sand.u32 %s50, 1
          %s147 = scalar_lea.sflag [#allocation7], %s146
          %s148 = sand.u32 %s50, 1
          %s149 = smul.addr %s148, 8
          %s150 = scalar_lea.vmem [#allocation6], %s149
          %s151 = sadd.s32 %s25, %s26
          %s152 = smul.u32 2, %s151
          %154 = vsyncadd %s147, 0
          %s155 = smul.addr %s24, 2
          %s156 = sadd.s32 %s152, %s155
          %s157 = smul.addr %s156, 4
          %s158 = scalar_lea.hbm %s0, %s157
          %s160 = sshll.u32 %s158, 4
          %s161 = int_to_ptr.hbm [resolvable:$true] %s160
          %s162 = sshll.u32 %s150, 4
          %s163 = int_to_ptr.vmem [resolvable:$true] %s162
          %165 = dma.hbm_to_vmem [thread:$0]  %s161, 128, %s163, %s147
        $region20: #{tpu_custom_call.1} parent=15 // pred_fallthru
          _
        // Predicated region
        $region21: #{tpu_custom_call.1} parent=15 // pred_check
          %p166 = pneg %p90
        $region22: #{tpu_custom_call.1} parent=15 // pred_check_branch
          %168 = sbr.rel (%p166) target = $region24
        $region23: #{tpu_custom_call.1} parent=15 // pred_region
          %s169 = sand.u32 %s80, 1
          %s170 = scalar_lea.sflag [#allocation10], %s169
          %s171 = sand.u32 %s80, 1
          %s172 = smul.addr %s171, 2
          %s173 = scalar_lea.vmem [#allocation9], %s172
          %s174 = sadd.s32 %s25, %s26
          %s175 = smul.u32 2, %s174
          %177 = vsyncadd %s170, 0
          %s178 = smul.addr %s24, 2
          %s179 = sadd.s32 %s175, %s178
          %s180 = scalar_lea.hbm %s1, %s179
          %s182 = sshll.u32 %s180, 4
          %s183 = int_to_ptr.hbm [resolvable:$true] %s182
          %s184 = sshll.u32 %s173, 4
          %s185 = int_to_ptr.vmem [resolvable:$true] %s184
          %187 = dma.hbm_to_vmem [thread:$0]  %s183, 32, %s185, %s170
        $region24: #{tpu_custom_call.1} parent=15 // pred_fallthru
          _
      $region16: #{tpu_custom_call.1} parent=5 // pred_fallthru
        _
      %p188 = scmp.le.s32.totalorder 1, %s17
      %p189 = scmp.lt.s32.totalorder %s17, 3
      %p190 = pnand %p188, %p189
      %p191 = pneg %p190
      // Predicated region
      $region25: #{tpu_custom_call.1} parent=5 // pred_check
        _
      $region26: #{tpu_custom_call.1} parent=5 // pred_check_branch
        %193 = sbr.rel (%p190) target = $region28
      $region27: #{tpu_custom_call.1} parent=5 // pred_region
        %s194 = ssub.s32 %s17, 1
        %s195 = sand.u32 %s53, 1
        %s196 = scalar_lea.sflag [#allocation7], %s195
        %s197 = sand.u32 %s53, 1
        %s198 = smul.addr %s197, 8
        %s199 = scalar_lea.vmem [#allocation6], %s198
        // Predicated region
        $region29: #{tpu_custom_call.1} parent=27 // pred_check
          %p200 = pneg %p66
        $region30: #{tpu_custom_call.1} parent=27 // pred_check_branch
          %202 = sbr.rel (%p200) target = $region32
        $region31: #{tpu_custom_call.1} parent=27 // pred_region
          %204 = dma.done %s196, 128
        $region32: #{tpu_custom_call.1} parent=27 // pred_fallthru
          _
        %s205 = sand.u32 %s83, 1
        %s206 = scalar_lea.sflag [#allocation10], %s205
        %s207 = sand.u32 %s83, 1
        %s208 = smul.addr %s207, 2
        %s209 = scalar_lea.vmem [#allocation9], %s208
        // Predicated region
        $region33: #{tpu_custom_call.1} parent=27 // pred_check
          %p210 = pneg %p96
        $region34: #{tpu_custom_call.1} parent=27 // pred_check_branch
          %212 = sbr.rel (%p210) target = $region36
        $region35: #{tpu_custom_call.1} parent=27 // pred_region
          %214 = dma.done %s206, 32
        $region36: #{tpu_custom_call.1} parent=27 // pred_fallthru
          _
        %s215 = sand.u32 %s53, 1
        %s216 = scalar_lea.sflag [#allocation7], %s215
        %s217 = sand.u32 %s53, 1
        %s218 = smul.addr %s217, 8
        %s219 = scalar_lea.vmem [#allocation6], %s218
        %p220 = pneg %p66
        %p221 = pneg %p63
        %s222 = sand.u32 %s83, 1
        %s223 = scalar_lea.sflag [#allocation10], %s222
        %s224 = sand.u32 %s83, 1
        %s225 = smul.addr %s224, 2
        %s226 = scalar_lea.vmem [#allocation9], %s225
        %p227 = pneg %p96
        %p228 = pneg %p93
        %p229 = pneg %p124
        %p230 = pneg %p121
        %s231 = sand.u32 %s111, 1
        %s232 = scalar_lea.sflag [#allocation8], %s231
        %s233 = sand.u32 %s111, 1
        %s234 = smul.addr %s233, 4
        %s235 = scalar_lea.vmem [#allocation11], %s234
        %s236 = sadd.s32 %s28, %s29
        %s237 = smul.u32 2, %s236
        %s238 = sadd.s32 %s28, %s29
        %s239 = smul.u32 2, %s238
        %p240 = scmp.eq.s32.totalorder %s29, 0
        // Predicated region
        $region37: #{tpu_custom_call.1} parent=27 // pred_check
          %p241 = pneg %p240
        $region38: #{tpu_custom_call.1} parent=27 // pred_check_branch
          %243 = sbr.rel (%p241) target = $region40
        $region39: #{tpu_custom_call.1} parent=27 // pred_region
          %vm244 = vcmask 3072
          %245 = vst.msk [vmem:[#allocation2] sm:$0xf] %vm244, 0.0
          %246 = vst.msk [vmem:[#allocation3] sm:$0xf] %vm244, 0.0
          %247 = vst.msk [vmem:[#allocation4] sm:$0xf] %vm244, 0.0
          %248 = vst.msk [vmem:[#allocation5] sm:$0xf] %vm244, 0.0
        $region40: #{tpu_custom_call.1} parent=27 // pred_fallthru
          _
        %v249 = vld [vmem:[%s199] sm:$0xff]
        %v250 = vld [vmem:[%s209] sm:$0x3]
        %252 = vst [vmem:[#allocation1] ss:$2 sm:$0xff] %v249
        %v253 = vld.sshfl [vmem:[#allocation1] sm:$0xff pattern:$0x75316420]
        %v254 = vld.sshfl [vmem:[#allocation1 + $0x8] sm:$0xff pattern:$0x75316420]
        %vm257 = vcmask 1043456
        %v258 = vsel %vm257, %v253, -inf
        %v259 = vrot.slane %v258, 4
        %v260 = vmax.f32 %v258, %v259
        %v261 = vrot.slane %v260, 2
        %v262 = vmax.f32 %v260, %v261
        %v263 = vrot.slane %v262, 1
        %v264 = vmax.f32 %v262, %v263
        %v265 = vsel %vm257, %v254, -inf
        %v266 = vrot.slane %v265, 4
        %v267 = vmax.f32 %v265, %v266
        %v268 = vrot.slane %v267, 2
        %v269 = vmax.f32 %v267, %v268
        %v270 = vrot.slane %v269, 1
        %v271 = vmax.f32 %v269, %v270
        %v274 = vrot.slane %v271, 4
        %v275 = vsel %vm257, %v264, %v274
        %v277 = vsub.f32 %v249, %v275
        %v278 = vmul.f32 %v277, 1.442695
        %v279 = vpow.pop %v278
        %281 = vst [vmem:[#allocation1] ss:$2 sm:$0xff] %v279
        %v282 = vld.sshfl [vmem:[#allocation1] sm:$0xff pattern:$0x75316420]
        %v283 = vld.sshfl [vmem:[#allocation1 + $0x8] sm:$0xff pattern:$0x75316420]
        %v286 = vsel %vm257, %v282, 0.0
        %v287 = vrot.slane %v286, 4
        %v288 = vadd.f32 %v286, %v287
        %v289 = vrot.slane %v288, 2
        %v290 = vadd.f32 %v288, %v289
        %v291 = vrot.slane %v290, 1
        %v292 = vadd.f32 %v290, %v291
        %v293 = vsel %vm257, %v283, 0.0
        %v294 = vrot.slane %v293, 4
        %v295 = vadd.f32 %v293, %v294
        %v296 = vrot.slane %v295, 2
        %v297 = vadd.f32 %v295, %v296
        %v298 = vrot.slane %v297, 1
        %v299 = vadd.f32 %v297, %v298
        %v300 = vrcp.pop %v292
        %v301 = vrcp.pop %v299
        %v304 = vrot.slane %v301, 4
        %v305 = vsel %vm257, %v300, %v304
        %v307 = vmul.f32 %v279, %v305
        %v308 = vlog2.pop %v292
        %v309 = vmul.f32 %v308, 0.6931472
        %v310 = vlog2.pop %v299
        %v311 = vmul.f32 %v310, 0.6931472
        %v312 = vadd.f32 %v264, %v309
        %v313 = vadd.f32 %v271, %v311
        %v314 = vlaneseq
        %v315 = vshrl.u32 %v314, 7
        %v316 = vperm.slane %v250, 0
        %v317 = vperm.slane %v250, 1
        %vm318 = vcmp.eq.s32.totalorder %v315, %v316
        %vm319 = vcmp.eq.s32.totalorder %v315, %v317
        %v320 = vsel %vm318, 1, 0
        %v321 = vsel %vm319, 1, 0
        %v322 = vcvt.s32.f32 %v320
        %v323 = vcvt.s32.f32 %v321
        %v324 = vld [vmem:[#allocation2] sm:$0xf]
        %v325 = vsel %vm257, %v322, 0.0
        %v326 = vsel %vm257, %v323, 0.0
        %v327 = vadd.f32 %v325, %v326
        %328 = vadd.xlane.f32.xlu0 %v327
        %v329 = vpop.xlane.xlu0 %328
        %v330 = vadd.f32 %v324, %v329
        %vm331 = vcmask 3072
        %332 = vst.msk [vmem:[#allocation2] sm:$0xf] %vm331, %v330
        %v333 = vld [vmem:[#allocation3] sm:$0xf]
        %v336 = vrot.slane %v323, 4
        %v337 = vsel %vm257, %v322, %v336
        %v339 = vmul.f32 %v307, %v337
        %341 = vst [vmem:[#allocation1] ss:$2 sm:$0xff] %v339
        %v342 = vld.sshfl [vmem:[#allocation1] sm:$0xff pattern:$0x75316420]
        %v343 = vld.sshfl [vmem:[#allocation1 + $0x8] sm:$0xff pattern:$0x75316420]
        %v346 = vsel %vm257, %v342, 0.0
        %v347 = vsel %vm257, %v343, 0.0
        %v348 = vadd.f32 %v346, %v347
        %349 = vadd.xlane.f32.xlu0 %v348
        %v350 = vpop.xlane.xlu0 %349
        %v351 = vadd.f32 %v333, %v350
        %352 = vst.msk [vmem:[#allocation3] sm:$0xf] %vm331, %v351
        %v353 = vld [vmem:[#allocation4] sm:$0xf]
        %v354 = vmul.f32 %v307, %v307
        %356 = vst [vmem:[#allocation1] ss:$2 sm:$0xff] %v354
        %v357 = vld.sshfl [vmem:[#allocation1] sm:$0xff pattern:$0x75316420]
        %v358 = vld.sshfl [vmem:[#allocation1 + $0x8] sm:$0xff pattern:$0x75316420]
        %v361 = vsel %vm257, %v357, 0.0
        %v362 = vsel %vm257, %v358, 0.0
        %v363 = vadd.f32 %v361, %v362
        %364 = vadd.xlane.f32.xlu0 %v363
        %v365 = vpop.xlane.xlu0 %364
        %v366 = vadd.f32 %v353, %v365
        %367 = vst.msk [vmem:[#allocation4] sm:$0xf] %vm331, %v366
        %v368 = vld [vmem:[#allocation5] sm:$0xf]
        %369 = vst [vmem:[#allocation1] ss:$2 sm:$0xff] %v249
        %v370 = vld.sshfl [vmem:[#allocation1] sm:$0xff pattern:$0x75316420]
        %v371 = vld.sshfl [vmem:[#allocation1 + $0x8] sm:$0xff pattern:$0x75316420]
        %v374 = vsub.f32 %v312, %v370
        %v375 = vsub.f32 %v313, %v371
        %v376 = vmul.f32 %v322, %v374
        %v377 = vmul.f32 %v323, %v375
        %v378 = vsel %vm257, %v376, 0.0
        %v379 = vsel %vm257, %v377, 0.0
        %v380 = vadd.f32 %v378, %v379
        %381 = vadd.xlane.f32.xlu0 %v380
        %v382 = vpop.xlane.xlu0 %381
        %v383 = vadd.f32 %v368, %v382
        %384 = vst.msk [vmem:[#allocation5] sm:$0xf] %vm331, %v383
        // Predicated region
        $region41: #{tpu_custom_call.1} parent=27 // pred_check
          %p385 = pneg %p240
        $region42: #{tpu_custom_call.1} parent=27 // pred_check_branch
          %387 = sbr.rel (%p385) target = $region44
        $region43: #{tpu_custom_call.1} parent=27 // pred_region
          %v388 = vld [vmem:[#allocation2] sm:$0xf]
          %v389 = vld [vmem:[#allocation3] sm:$0xf]
          %v390 = vld [vmem:[#allocation4] sm:$0xf]
          %v391 = vld [vmem:[#allocation5] sm:$0xf]
          %393 = vrot.lane.b32.xlu0 %v389, 1
          %v394 = vpop.permute.xlu0 %393
          %397 = vrot.lane.b32.xlu0 %v390, 2
          %v398 = vpop.permute.xlu0 %397
          %401 = vrot.lane.b32.xlu0 %v391, 3
          %v402 = vpop.permute.xlu0 %401
          %vm404 = vcmask 7168
          %v405 = vsel %vm404, %v388, %v394
          %vm406 = vcmask 15360
          %v407 = vsel %vm406, %v405, %v398
          %vm408 = vcmask 23552
          %v409 = vsel %vm408, %v407, %v402
          %vm410 = vcmask 27648
          %411 = vst.msk [vmem:[%s235] sm:$0xf] %vm410, %v409
        $region44: #{tpu_custom_call.1} parent=27 // pred_fallthru
          _
        %s412 = sand.u32 %s111, 1
        %s413 = scalar_lea.sflag [#allocation8], %s412
        %s414 = sand.u32 %s111, 1
        %s415 = smul.addr %s414, 4
        %s416 = scalar_lea.vmem [#allocation11], %s415
        // Predicated region
        $region45: #{tpu_custom_call.1} parent=27 // pred_check
          %p417 = pneg %p121
        $region46: #{tpu_custom_call.1} parent=27 // pred_check_branch
          %419 = sbr.rel (%p417) target = $region48
        $region47: #{tpu_custom_call.1} parent=27 // pred_region
          %421 = vsyncadd %s413, 0
          %s422 = sadd.s32 %s28, %s27
          %s423 = smul.addr %s422, 4
          %s424 = scalar_lea.hbm %s2, %s423
          %s426 = sshll.u32 %s416, 4
          %s427 = int_to_ptr.vmem [resolvable:$true] %s426
          %s428 = sshll.u32 %s424, 4
          %s429 = int_to_ptr.hbm [resolvable:$true] %s428
          %431 = dma.vmem_to_hbm [thread:$0]  %s427, 64, %s429, %s413
        $region48: #{tpu_custom_call.1} parent=27 // pred_fallthru
          _
      $region28: #{tpu_custom_call.1} parent=5 // pred_fallthru
        _
      %p432 = scmp.le.s32.totalorder 2, %s17
      // Predicated region
      $region49: #{tpu_custom_call.1} parent=5 // pred_check
        %p433 = pneg %p432
      $region50: #{tpu_custom_call.1} parent=5 // pred_check_branch
        %435 = sbr.rel (%p433) target = $region52
      $region51: #{tpu_custom_call.1} parent=5 // pred_region
        %s436 = ssub.s32 %s17, 2
        // Predicated region
        $region53: #{tpu_custom_call.1} parent=51 // pred_check
          %p437 = pneg %p127
        $region54: #{tpu_custom_call.1} parent=51 // pred_check_branch
          %439 = sbr.rel (%p437) target = $region56
        $region55: #{tpu_custom_call.1} parent=51 // pred_region
          %s440 = sand.u32 %s112, 1
          %s441 = scalar_lea.sflag [#allocation8], %s440
          %s442 = sand.u32 %s112, 1
          %s443 = smul.addr %s442, 4
          %s444 = scalar_lea.vmem [#allocation11], %s443
          %446 = dma.done %s441, 64
        $region56: #{tpu_custom_call.1} parent=51 // pred_fallthru
          _
      $region52: #{tpu_custom_call.1} parent=5 // pred_fallthru
        _
    $region6: #{tpu_custom_call.1} parent=1 // loop_footer
      %s21 = sadd.s32 1, %s17
    $region7: #{tpu_custom_call.1} parent=1 // loop_footer_branch
      %16 = sbr.rel target = $region3
    $region8: #{tpu_custom_call.1} parent=1 // loop_exit
      _
    %447 = vsyncpa [#allocation7], 1
    %s448 = scalar_lea.sflag [#allocation7], 1
    %449 = vsyncpa %s448, 1
    %450 = vsyncpa [#allocation10], 1
    %s451 = scalar_lea.sflag [#allocation10], 1
    %452 = vsyncpa %s451, 1
    %453 = vsyncpa [#allocation8], 1
    %s454 = scalar_lea.sflag [#allocation8], 1
    %455 = vsyncpa %s454, 1

</llo_original>
